<compile_context>
chip_gen: v7x
topology: tpu7x:2x2x1
jax: 0.10.0
libtpu: 0.0.40
codegen_flags: <defaults>
</compile_context>

<pallas_src>
import jax
import jax.numpy as jnp
from jax.experimental import pallas as pl
from jax.experimental.pallas import tpu as pltpu

# ----------------------------- toy config -----------------------------------
B = 2             # batch
T = 64            # sequence length
C = 128           # n_embd  (multiple of 128 -> lane-dense activations/output)
H = 4 * C         # MLP hidden width (= 512)

_SQRT_2_OVER_PI = 0.7978845608028654


# ----------------------------- kernel ---------------------------------------
def mlp_kernel(x_ref, w_fc_ref, b_fc_ref, w_proj_ref, b_proj_ref, o_ref):
    """One row-tile of the MLP forward.

    x_ref      : (tile_m, C)  f32 activations for this grid step
    w_fc_ref   : (C, 4C)      bf16 c_fc weight (pre-transposed, VMEM-resident)
    b_fc_ref   : (1, 4C)      f32 c_fc bias
    w_proj_ref : (4C, C)      bf16 c_proj weight (pre-transposed, VMEM-resident)
    b_proj_ref : (1, C)       f32 c_proj bias
    o_ref      : (tile_m, C)  output tile
    """
    x = x_ref[...]                                             # f32 (tile_m, C)

    # ---- c_fc: bf16 operands on the MXU, f32 accumulate, f32 bias add
    h = jnp.dot(x.astype(jnp.bfloat16), w_fc_ref[...],
                preferred_element_type=jnp.float32) + b_fc_ref[...]

    # ---- GELU (tanh approximation), f32 elementwise (VPU) + tanh (EUP)
    #   0.5 * h * (1 + tanh( sqrt(2/pi) * h * (1 + 0.044715 * h^2) ))
    inner = _SQRT_2_OVER_PI * h * (1.0 + 0.044715 * (h * h))
    g = 0.5 * h * (1.0 + jnp.tanh(inner))                      # f32 (tile_m, 4C)

    # ---- c_proj: cast g to bf16 in-kernel, f32 accumulate, f32 bias add
    out = jnp.dot(g.astype(jnp.bfloat16), w_proj_ref[...],
                  preferred_element_type=jnp.float32) + b_proj_ref[...]

    o_ref[...] = out.astype(o_ref.dtype)


# ----------------------------- one-time parameter prep ----------------------
def prepare_mlp_params(w_fc, b_fc, w_proj, b_proj):
    """One-time layout/dtype prep (do at weight-load time, not per call).

    torch layout in:  w_fc (4C, C), b_fc (4C,), w_proj (C, 4C), b_proj (C,)
    out: (w_fc_t bf16 (C,4C), b_fc (1,4C) f32, w_proj_t bf16 (4C,C), b_proj (1,C) f32)
    """
    Hx, Cx = w_fc.shape
    return (
        w_fc.T.astype(jnp.bfloat16),                 # (C, 4C)
        b_fc.reshape(1, Hx).astype(jnp.float32),     # (1, 4C)
        w_proj.T.astype(jnp.bfloat16),               # (4C, C)
        b_proj.reshape(1, Cx).astype(jnp.float32),   # (1, C)
    )


# ----------------------------- wrapper ---------------------------------------
def mlp_forward(x, prepared_params, *, tile_m=256,
                vmem_limit_bytes=48 * 1024 * 1024):
    """x: (B, T, C) f32. prepared_params: output of prepare_mlp_params()."""
    w_fc_t, b_fc2, w_proj_t, b_proj2 = prepared_params
    Bx, Tx, Cx = x.shape
    Hx = w_fc_t.shape[1]
    BT = Bx * Tx

    x2d = x.reshape(BT, Cx)

    # Row tile: biggest requested tile that fits, multiple of 8 (sublane).
    tile_m = min(tile_m, BT)
    if tile_m < BT:
        tile_m = max(8, (tile_m // 8) * 8)
    grid_m = pl.cdiv(BT, tile_m)

    # Grid-invariant (VMEM-resident) weights: single-buffered to save VMEM.
    def weight_spec(shape):
        return pl.BlockSpec(shape, lambda i: (0, 0),
                            pipeline_mode=pl.Buffered(1))

    out2d = pl.pallas_call(
        mlp_kernel,
        out_shape=jax.ShapeDtypeStruct((BT, Cx), x.dtype),
        grid_spec=pltpu.PrefetchScalarGridSpec(
            num_scalar_prefetch=0,
            grid=(grid_m,),                                   # rows only
            in_specs=[
                pl.BlockSpec((tile_m, Cx), lambda i: (i, 0)),  # x row tile
                weight_spec((Cx, Hx)),                         # w_fc_t  (resident)
                pl.BlockSpec((1, Hx), lambda i: (0, 0)),       # b_fc
                weight_spec((Hx, Cx)),                         # w_proj_t (resident)
                pl.BlockSpec((1, Cx), lambda i: (0, 0)),       # b_proj
            ],
            out_specs=pl.BlockSpec((tile_m, Cx), lambda i: (i, 0)),
        ),
        compiler_params=pltpu.CompilerParams(
            # Row axis is independent -> shard across v7x's 2 TensorCores.
            dimension_semantics=("parallel",),
            vmem_limit_bytes=vmem_limit_bytes,
        ),
    )(x2d, w_fc_t, b_fc2, w_proj_t, b_proj2)

    return out2d.reshape(Bx, Tx, Cx)
    # TODO(synk): if H is ever tiled (VMEM reasons at very large C), add an f32
    # VMEM accumulator with pl.when init/writeback and put that axis last.


# ----------------------------- reference (pure JAX, f32) ---------------------
def reference(x, w_fc, b_fc, w_proj, b_proj):
    h = x @ w_fc.T + b_fc
    g = jax.nn.gelu(h, approximate=True)      # tanh approximation (== torch)
    return g @ w_proj.T + b_proj


# ----------------------------- main ------------------------------------------
if __name__ == "__main__":
    key = jax.random.PRNGKey(0)
    kx, k1, k2, k3, k4 = jax.random.split(key, 5)

    x = jax.random.normal(kx, (B, T, C), dtype=jnp.float32)

    # GPT-2-ish deterministic init: normal * 0.02, torch Linear layout.
    w_fc = jax.random.normal(k1, (H, C), dtype=jnp.float32) * 0.02
    b_fc = jax.random.normal(k2, (H,), dtype=jnp.float32) * 0.02
    w_proj = jax.random.normal(k3, (C, H), dtype=jnp.float32) * 0.02
    b_proj = jax.random.normal(k4, (C,), dtype=jnp.float32) * 0.02

    # One-time weight prep (transpose + bf16 + bias reshape), then forward.
    params = prepare_mlp_params(w_fc, b_fc, w_proj, b_proj)
    # tile_m=64 (< BT=128) to exercise the row-tiled pipeline at toy size.
    out = mlp_forward(x, params, tile_m=64)
    out = jax.block_until_ready(out)

    ref = reference(x, w_fc, b_fc, w_proj, b_proj)
    assert out.shape == (B, T, C)
    # bf16 MXU operands vs f32 reference -> loosened tolerance.
    max_err = float(jnp.max(jnp.abs(out - ref)))
    assert jnp.allclose(out, ref, atol=2e-2, rtol=2e-2), (
        f"mismatch vs reference (max abs err {max_err})")

    print("KERNEL_OK")
</pallas_src>

<mosaic_0001>
module attributes {stable_mosaic.version = 11 : i64} {
  func.func @mlp_kernel(%arg0: i32, %arg1: memref<64x128xf32, #tpu.memory_space<vmem>>, %arg2: memref<128x512xbf16, #tpu.memory_space<vmem>>, %arg3: memref<1x512xf32, #tpu.memory_space<vmem>>, %arg4: memref<512x128xbf16, #tpu.memory_space<vmem>>, %arg5: memref<1x128xf32, #tpu.memory_space<vmem>>, %arg6: memref<64x128xf32, #tpu.memory_space<vmem>>) attributes {dimension_semantics = [#tpu.dimension_semantics<parallel>], iteration_bounds = array<i64: 2>, scalar_prefetch = 0 : i64, scratch_operands = 0 : i64, tpu.core_type = #tpu.core_type<tc>, window_params = [{transform_indices = @transform_0, window_bounds = array<i64: 64, 128>}, {pipeline_mode = #tpu.pipeline_mode<synchronous>, transform_indices = @transform_1, window_bounds = array<i64: 128, 512>}, {pipeline_mode = #tpu.pipeline_mode<synchronous>, transform_indices = @transform_2, window_bounds = array<i64: 1, 512>}, {pipeline_mode = #tpu.pipeline_mode<synchronous>, transform_indices = @transform_3, window_bounds = array<i64: 512, 128>}, {pipeline_mode = #tpu.pipeline_mode<synchronous>, transform_indices = @transform_4, window_bounds = array<i64: 1, 128>}, {transform_indices = @transform_5, window_bounds = array<i64: 64, 128>}]} {
    %c0 = arith.constant 0 : index
    %c0_0 = arith.constant 0 : index
    %0 = vector.load %arg1[%c0, %c0_0] : memref<64x128xf32, #tpu.memory_space<vmem>>, vector<64x128xf32>
    %1 = arith.truncf %0 : vector<64x128xf32> to vector<64x128xbf16>
    %c0_1 = arith.constant 0 : index
    %c0_2 = arith.constant 0 : index
    %2 = vector.load %arg2[%c0_1, %c0_2] : memref<128x512xbf16, #tpu.memory_space<vmem>>, vector<128x512xbf16>
    %cst = arith.constant dense<0.000000e+00> : vector<64x512xf32>
    %3 = tpu.matmul %1, %2, %cst {dimension_numbers = #tpu.dot_dimension_numbers<[1], [0], [0], [1], [0, 0, 1, 1], [], []>} : vector<64x128xbf16>, vector<128x512xbf16>, vector<64x512xf32> -> vector<64x512xf32>
    %c0_3 = arith.constant 0 : index
    %c0_4 = arith.constant 0 : index
    %4 = vector.load %arg3[%c0_3, %c0_4] : memref<1x512xf32, #tpu.memory_space<vmem>>, vector<1x512xf32>
    %5 = vector.broadcast %4 : vector<1x512xf32> to vector<64x512xf32>
    %6 = arith.addf %3, %5 : vector<64x512xf32>
    %cst_5 = arith.constant 0.797884583 : f32
    %7 = vector.broadcast %cst_5 : f32 to vector<64x512xf32>
    %8 = arith.mulf %7, %6 : vector<64x512xf32>
    %9 = arith.mulf %6, %6 : vector<64x512xf32>
    %cst_6 = arith.constant 4.471500e-02 : f32
    %10 = vector.broadcast %cst_6 : f32 to vector<64x512xf32>
    %11 = arith.mulf %10, %9 : vector<64x512xf32>
    %cst_7 = arith.constant 1.000000e+00 : f32
    %12 = vector.broadcast %cst_7 : f32 to vector<64x512xf32>
    %13 = arith.addf %12, %11 : vector<64x512xf32>
    %14 = arith.mulf %8, %13 : vector<64x512xf32>
    %cst_8 = arith.constant 5.000000e-01 : f32
    %15 = vector.broadcast %cst_8 : f32 to vector<64x512xf32>
    %16 = arith.mulf %15, %6 : vector<64x512xf32>
    %17 = math.tanh %14 : vector<64x512xf32>
    %cst_9 = arith.constant 1.000000e+00 : f32
    %18 = vector.broadcast %cst_9 : f32 to vector<64x512xf32>
    %19 = arith.addf %18, %17 : vector<64x512xf32>
    %20 = arith.mulf %16, %19 : vector<64x512xf32>
    %21 = arith.truncf %20 : vector<64x512xf32> to vector<64x512xbf16>
    %c0_10 = arith.constant 0 : index
    %c0_11 = arith.constant 0 : index
    %22 = vector.load %arg4[%c0_10, %c0_11] : memref<512x128xbf16, #tpu.memory_space<vmem>>, vector<512x128xbf16>
    %cst_12 = arith.constant dense<0.000000e+00> : vector<64x128xf32>
    %23 = tpu.matmul %21, %22, %cst_12 {dimension_numbers = #tpu.dot_dimension_numbers<[1], [0], [0], [1], [0, 0, 1, 1], [], []>} : vector<64x512xbf16>, vector<512x128xbf16>, vector<64x128xf32> -> vector<64x128xf32>
    %c0_13 = arith.constant 0 : index
    %c0_14 = arith.constant 0 : index
    %24 = vector.load %arg5[%c0_13, %c0_14] : memref<1x128xf32, #tpu.memory_space<vmem>>, vector<1x128xf32>
    %25 = vector.broadcast %24 : vector<1x128xf32> to vector<64x128xf32>
    %26 = arith.addf %23, %25 : vector<64x128xf32>
    %c0_15 = arith.constant 0 : index
    %c0_16 = arith.constant 0 : index
    %27 = vector.load %arg6[%c0_15, %c0_16] : memref<64x128xf32, #tpu.memory_space<vmem>>, vector<64x128xf32>
    tpu.vector_store %arg6[%c0_15, %c0_16], %26 {strides = array<i32>} : memref<64x128xf32, #tpu.memory_space<vmem>>, vector<64x128xf32>,
    return
  }
  func.func @transform_0(%arg0: i32) -> (i32, i32) {
    %c0_i32 = arith.constant 0 : i32
    %c0_i32_0 = arith.constant 0 : i32
    return %arg0, %c0_i32 : i32, i32
  }
  func.func @transform_1(%arg0: i32) -> (i32, i32) {
    %c0_i32 = arith.constant 0 : i32
    %c0_i32_0 = arith.constant 0 : i32
    %c0_i32_1 = arith.constant 0 : i32
    return %c0_i32, %c0_i32_0 : i32, i32
  }
  func.func @transform_2(%arg0: i32) -> (i32, i32) {
    %c0_i32 = arith.constant 0 : i32
    %c0_i32_0 = arith.constant 0 : i32
    %c0_i32_1 = arith.constant 0 : i32
    return %c0_i32, %c0_i32_0 : i32, i32
  }
  func.func @transform_3(%arg0: i32) -> (i32, i32) {
    %c0_i32 = arith.constant 0 : i32
    %c0_i32_0 = arith.constant 0 : i32
    %c0_i32_1 = arith.constant 0 : i32
    return %c0_i32, %c0_i32_0 : i32, i32
  }
  func.func @transform_4(%arg0: i32) -> (i32, i32) {
    %c0_i32 = arith.constant 0 : i32
    %c0_i32_0 = arith.constant 0 : i32
    %c0_i32_1 = arith.constant 0 : i32
    return %c0_i32, %c0_i32_0 : i32, i32
  }
  func.func @transform_5(%arg0: i32) -> (i32, i32) {
    %c0_i32 = arith.constant 0 : i32
    %c0_i32_0 = arith.constant 0 : i32
    return %arg0, %c0_i32 : i32, i32
  }
}

</mosaic_0001>

<llo_original>
// kernel: tpu_custom_call.1
$region0: #{tpu_custom_call.1}
  #allocation0 [shape = 'u32[]', space=smem, size = 0x4, offset = 0x4, fixed_abs, tag = 'smem constant byte address 0x4 - core index']
  #allocation1 [shape = 'u32[144,128]{1,0:T(1,128)}', space=vmem, size = 0x12000, scoped, tag = 'internal scratch']
  %s0 = inlined_call_operand.hbm [shape: f32[128,128], index: 0, kind: input, shape index: {}]
  %s1 = inlined_call_operand.hbm [shape: bf16[128,512], index: 1, kind: input, shape index: {}]
  %s2 = inlined_call_operand.vmem [shape: f32[1,512], index: 2, kind: input, shape index: {}]
  %s3 = inlined_call_operand.hbm [shape: bf16[512,128], index: 3, kind: input, shape index: {}]
  %s4 = inlined_call_operand.vmem [shape: f32[1,128], index: 4, kind: input, shape index: {}]
  %s5 = inlined_call_operand.hbm [shape: f32[128,128], index: 5, kind: output, shape index: {}]
  %s6 = sld [smem:[#allocation0]]
  $region65: #{tpu_custom_call.1} parent=0
    _
  %s8 = ssub.s32 1, %s6
  %s9 = scalar_select 0, %s8, %s6
  $region1: #{tpu_custom_call.1} parent=0
    #allocation2 [shape = 'u8[65536]{0}', space=vmem, size = 0x10000, scoped, tag = 'input window, operand 0']
    #allocation3 [shape = 's32[2]{0}', space=sflag, size = 0x8, scoped, tag = 'scoped memory for tpu_custom_call.1']
    #allocation4 [shape = 's32[2]{0}', space=sflag, size = 0x8, scoped, tag = 'scoped memory for tpu_custom_call.1']
    #allocation5 [shape = 'u8[131072]{0}', space=vmem, size = 0x20000, scoped, tag = 'input window, operand 1, single buffered']
    #allocation6 [shape = 's32[1]{0}', space=sflag, size = 0x4, scoped, tag = 'scoped memory for tpu_custom_call.1']
    #allocation7 [shape = 'u8[131072]{0}', space=vmem, size = 0x20000, scoped, tag = 'input window, operand 3, single buffered']
    #allocation8 [shape = 'u8[65536]{0}', space=vmem, size = 0x10000, scoped, tag = 'output window, operand 0']
    %10 = vsyncpa [#allocation3], 0
    %s11 = scalar_lea.sflag [#allocation3], 1
    %12 = vsyncpa %s11, 0
    %13 = vsyncpa [#allocation6], 0
    %14 = vsyncpa [#allocation4], 0
    %s15 = scalar_lea.sflag [#allocation4], 1
    %16 = vsyncpa %s15, 0
    loop: start=0, step=1, limit=4
    $region2: #{tpu_custom_call.1} parent=1 // loop_pre_header
      _
    $region3: #{tpu_custom_call.1} parent=1 // loop_header
      %s18 = sphi 0, %s22
      %p19 = scmp.ge.s32.totalorder %s18, 4
      %s28 = sphi 0, %s30
      %s31 = sphi 0, %s28
      %s32 = sphi 0, %s31
      %s48 = sphi 0, %s32
      %s52 = sphi 0, %s52
      %s54 = sphi 0, %s52
      %s55 = sphi 0, %s54
      %s69 = sphi 0, %s55
      %s73 = sphi 0, %s73
      %s75 = sphi 0, %s73
      %s76 = sphi 0, %s75
      %s90 = sphi 0, %s76
      %s94 = sphi 0, %s94
      %s96 = sphi 0, %s94
      %s97 = sphi 0, %s96
      %s111 = sphi 0, %s97
      %s115 = sphi 0, %s115
      %s117 = sphi 0, %s115
      %s118 = sphi 0, %s117
      %s132 = sphi 0, %s118
      %s138 = sphi 0, %s140
      %s141 = sphi 0, %s138
      %s142 = sphi 0, %s141
      %s158 = sphi 0, %s142
    $region4: #{tpu_custom_call.1} parent=1 // loop_header_branch
      %21 = sbr.rel (%p19) target = $region8
    $region5: #{tpu_custom_call.1} parent=1 // loop_body
      %s23 = ssub.s32 %s18, 1
      %s24 = ssub.s32 %s18, 2
      %s25 = sadd.s32 %s18, 1
      %s26 = ssub.s32 %s18, %s25
      %p27 = scmp.eq.s32.totalorder %s26, 0
      %s29 = sadd.s32 %s28, 1
      %s30 = scalar_select %p27, %s28, %s29
      %p33 = pneg %p27
      %p34 = scmp.eq.s32.totalorder %s18, 1
      %p35 = por %p33, %p34
      %p36 = scmp.ne.s32.totalorder %s28, %s31
      %p37 = scmp.eq.s32.totalorder %s18, 0
      %p38 = por %p36, %p37
      %p39 = scmp.ne.s32.totalorder %s28, %s31
      %p40 = scmp.eq.s32.totalorder %s23, 1
      %p41 = por %p39, %p40
      %p42 = scmp.ne.s32.totalorder %s31, %s32
      %p43 = scmp.eq.s32.totalorder %s23, 0
      %p44 = por %p42, %p43
      %p45 = scmp.ne.s32.totalorder %s31, %s32
      %p46 = scmp.eq.s32.totalorder %s24, 1
      %p47 = por %p45, %p46
      %p49 = scmp.ne.s32.totalorder %s32, %s48
      %p50 = scmp.eq.s32.totalorder %s24, 0
      %p51 = por %p49, %p50
      %s53 = sadd.s32 %s52, 1
      %p56 = scmp.eq.s32.totalorder %s18, 1
      %p57 = scmp.ne.s32.totalorder %s52, %s54
      %p58 = scmp.eq.s32.totalorder %s18, 0
      %p59 = por %p57, %p58
      %p60 = scmp.ne.s32.totalorder %s52, %s54
      %p61 = scmp.eq.s32.totalorder %s23, 1
      %p62 = por %p60, %p61
      %p63 = scmp.ne.s32.totalorder %s54, %s55
      %p64 = scmp.eq.s32.totalorder %s23, 0
      %p65 = por %p63, %p64
      %p66 = scmp.ne.s32.totalorder %s54, %s55
      %p67 = scmp.eq.s32.totalorder %s24, 1
      %p68 = por %p66, %p67
      %p70 = scmp.ne.s32.totalorder %s55, %s69
      %p71 = scmp.eq.s32.totalorder %s24, 0
      %p72 = por %p70, %p71
      %s74 = sadd.s32 %s73, 1
      %p77 = scmp.eq.s32.totalorder %s18, 1
      %p78 = scmp.ne.s32.totalorder %s73, %s75
      %p79 = scmp.eq.s32.totalorder %s18, 0
      %p80 = por %p78, %p79
      %p81 = scmp.ne.s32.totalorder %s73, %s75
      %p82 = scmp.eq.s32.totalorder %s23, 1
      %p83 = por %p81, %p82
      %p84 = scmp.ne.s32.totalorder %s75, %s76
      %p85 = scmp.eq.s32.totalorder %s23, 0
      %p86 = por %p84, %p85
      %p87 = scmp.ne.s32.totalorder %s75, %s76
      %p88 = scmp.eq.s32.totalorder %s24, 1
      %p89 = por %p87, %p88
      %p91 = scmp.ne.s32.totalorder %s76, %s90
      %p92 = scmp.eq.s32.totalorder %s24, 0
      %p93 = por %p91, %p92
      %s95 = sadd.s32 %s94, 1
      %p98 = scmp.eq.s32.totalorder %s18, 1
      %p99 = scmp.ne.s32.totalorder %s94, %s96
      %p100 = scmp.eq.s32.totalorder %s18, 0
      %p101 = por %p99, %p100
      %p102 = scmp.ne.s32.totalorder %s94, %s96
      %p103 = scmp.eq.s32.totalorder %s23, 1
      %p104 = por %p102, %p103
      %p105 = scmp.ne.s32.totalorder %s96, %s97
      %p106 = scmp.eq.s32.totalorder %s23, 0
      %p107 = por %p105, %p106
      %p108 = scmp.ne.s32.totalorder %s96, %s97
      %p109 = scmp.eq.s32.totalorder %s24, 1
      %p110 = por %p108, %p109
      %p112 = scmp.ne.s32.totalorder %s97, %s111
      %p113 = scmp.eq.s32.totalorder %s24, 0
      %p114 = por %p112, %p113
      %s116 = sadd.s32 %s115, 1
      %p119 = scmp.eq.s32.totalorder %s18, 1
      %p120 = scmp.ne.s32.totalorder %s115, %s117
      %p121 = scmp.eq.s32.totalorder %s18, 0
      %p122 = por %p120, %p121
      %p123 = scmp.ne.s32.totalorder %s115, %s117
      %p124 = scmp.eq.s32.totalorder %s23, 1
      %p125 = por %p123, %p124
      %p126 = scmp.ne.s32.totalorder %s117, %s118
      %p127 = scmp.eq.s32.totalorder %s23, 0
      %p128 = por %p126, %p127
      %p129 = scmp.ne.s32.totalorder %s117, %s118
      %p130 = scmp.eq.s32.totalorder %s24, 1
      %p131 = por %p129, %p130
      %p133 = scmp.ne.s32.totalorder %s118, %s132
      %p134 = scmp.eq.s32.totalorder %s24, 0
      %p135 = por %p133, %p134
      %s136 = ssub.s32 %s18, %s25
      %p137 = scmp.eq.s32.totalorder %s136, 0
      %s139 = sadd.s32 %s138, 1
      %s140 = scalar_select %p137, %s138, %s139
      %p143 = pneg %p137
      %p144 = scmp.eq.s32.totalorder %s18, 1
      %p145 = por %p143, %p144
      %p146 = scmp.ne.s32.totalorder %s138, %s141
      %p147 = scmp.eq.s32.totalorder %s18, 0
      %p148 = por %p146, %p147
      %p149 = scmp.ne.s32.totalorder %s138, %s141
      %p150 = scmp.eq.s32.totalorder %s23, 1
      %p151 = por %p149, %p150
      %p152 = scmp.ne.s32.totalorder %s141, %s142
      %p153 = scmp.eq.s32.totalorder %s23, 0
      %p154 = por %p152, %p153
      %p155 = scmp.ne.s32.totalorder %s141, %s142
      %p156 = scmp.eq.s32.totalorder %s24, 1
      %p157 = por %p155, %p156
      %p159 = scmp.ne.s32.totalorder %s142, %s158
      %p160 = scmp.eq.s32.totalorder %s24, 0
      %p161 = por %p159, %p160
      %p162 = scmp.le.s32.totalorder 1, %s18
      %p163 = scmp.lt.s32.totalorder %s18, 3
      %p164 = pnand %p162, %p163
      %p165 = pneg %p164
      // Predicated region
      $region9: #{tpu_custom_call.1} parent=5 // pred_check
        _
      $region10: #{tpu_custom_call.1} parent=5 // pred_check_branch
        %167 = sbr.rel (%p164) target = $region12
      $region11: #{tpu_custom_call.1} parent=5 // pred_region
        %s168 = ssub.s32 %s18, 1
        // Predicated region
        $region13: #{tpu_custom_call.1} parent=11 // pred_check
          %p169 = pneg %p65
        $region14: #{tpu_custom_call.1} parent=11 // pred_check_branch
          %171 = sbr.rel (%p169) target = $region16
        $region15: #{tpu_custom_call.1} parent=11 // pred_region
          %s173 = ssub.s32 4096, 4096
          %174 = vsyncadd [#allocation6], %s173
          %s175 = sshll.u32 [#allocation5], 4
          %s176 = int_to_ptr.vmem [resolvable:$true] %s175
          %181 = dma.hbm_to_vmem [thread:$0]  %s1, 4096, %s176, [#allocation6], 256, 256, 16
        $region16: #{tpu_custom_call.1} parent=11 // pred_fallthru
          _
        // Predicated region
        $region17: #{tpu_custom_call.1} parent=11 // pred_check
          %p182 = pneg %p86
        $region18: #{tpu_custom_call.1} parent=11 // pred_check_branch
          %184 = sbr.rel (%p182) target = $region20
        $region19: #{tpu_custom_call.1} parent=11 // pred_region
          _
        $region20: #{tpu_custom_call.1} parent=11 // pred_fallthru
          _
        // Predicated region
        $region21: #{tpu_custom_call.1} parent=11 // pred_check
          %p185 = pneg %p107
        $region22: #{tpu_custom_call.1} parent=11 // pred_check_branch
          %187 = sbr.rel (%p185) target = $region24
        $region23: #{tpu_custom_call.1} parent=11 // pred_region
          %s189 = ssub.s32 4096, 4096
          %190 = vsyncadd [#allocation6], %s189
          %s191 = sshll.u32 [#allocation7], 4
          %s192 = int_to_ptr.vmem [resolvable:$true] %s191
          %197 = dma.hbm_to_vmem [thread:$0]  %s3, 4096, %s192, [#allocation6], 64, 64, 4
        $region24: #{tpu_custom_call.1} parent=11 // pred_fallthru
          _
        // Predicated region
        $region25: #{tpu_custom_call.1} parent=11 // pred_check
          %p198 = pneg %p128
        $region26: #{tpu_custom_call.1} parent=11 // pred_check_branch
          %200 = sbr.rel (%p198) target = $region28
        $region27: #{tpu_custom_call.1} parent=11 // pred_region
          _
        $region28: #{tpu_custom_call.1} parent=11 // pred_fallthru
          _
      $region12: #{tpu_custom_call.1} parent=5 // pred_fallthru
        _
      %p201 = scmp.lt.s32.totalorder %s18, 2
      // Predicated region
      $region29: #{tpu_custom_call.1} parent=5 // pred_check
        %p202 = pneg %p201
      $region30: #{tpu_custom_call.1} parent=5 // pred_check_branch
        %204 = sbr.rel (%p202) target = $region32
      $region31: #{tpu_custom_call.1} parent=5 // pred_region
        // Predicated region
        $region33: #{tpu_custom_call.1} parent=31 // pred_check
          %p205 = pneg %p38
        $region34: #{tpu_custom_call.1} parent=31 // pred_check_branch
          %207 = sbr.rel (%p205) target = $region36
        $region35: #{tpu_custom_call.1} parent=31 // pred_region
          %s208 = sand.u32 %s28, 1
          %s209 = scalar_lea.sflag [#allocation3], %s208
          %s210 = sand.u32 %s28, 1
          %s211 = smul.addr %s210, 64
          %s212 = scalar_lea.vmem [#allocation2], %s211
          %s213 = smul.u32 8, %s18
          %s215 = ssub.s32 1024, 1024
          %216 = vsyncadd %s209, %s215
          %s217 = smul.addr %s213, 128
          %s218 = scalar_lea.hbm %s0, %s217
          %s219 = sshll.u32 %s212, 4
          %s220 = int_to_ptr.vmem [resolvable:$true] %s219
          %225 = dma.hbm_to_vmem [thread:$0]  %s218, 1024, %s220, %s209, 128, 128, 8
        $region36: #{tpu_custom_call.1} parent=31 // pred_fallthru
          _
      $region32: #{tpu_custom_call.1} parent=5 // pred_fallthru
        _
      %p226 = scmp.le.s32.totalorder 1, %s18
      %p227 = scmp.lt.s32.totalorder %s18, 3
      %p228 = pnand %p226, %p227
      %p229 = pneg %p228
      // Predicated region
      $region37: #{tpu_custom_call.1} parent=5 // pred_check
        _
      $region38: #{tpu_custom_call.1} parent=5 // pred_check_branch
        %231 = sbr.rel (%p228) target = $region40
      $region39: #{tpu_custom_call.1} parent=5 // pred_region
        %s232 = ssub.s32 %s18, 1
        %s233 = sand.u32 %s31, 1
        %s234 = scalar_lea.sflag [#allocation3], %s233
        %s235 = sand.u32 %s31, 1
        %s236 = smul.addr %s235, 64
        %s237 = scalar_lea.vmem [#allocation2], %s236
        // Predicated region
        $region41: #{tpu_custom_call.1} parent=39 // pred_check
          %p238 = pneg %p44
        $region42: #{tpu_custom_call.1} parent=39 // pred_check_branch
          %240 = sbr.rel (%p238) target = $region44
        $region43: #{tpu_custom_call.1} parent=39 // pred_region
          %241 = dma.done %s234, 1024
        $region44: #{tpu_custom_call.1} parent=39 // pred_fallthru
          _
        // Predicated region
        $region45: #{tpu_custom_call.1} parent=39 // pred_check
          %p242 = pneg %p65
        $region46: #{tpu_custom_call.1} parent=39 // pred_check_branch
          %244 = sbr.rel (%p242) target = $region48
        $region47: #{tpu_custom_call.1} parent=39 // pred_region
          %245 = dma.done [#allocation6], 4096
        $region48: #{tpu_custom_call.1} parent=39 // pred_fallthru
          _
        // Predicated region
        $region49: #{tpu_custom_call.1} parent=39 // pred_check
          %p246 = pneg %p107
        $region50: #{tpu_custom_call.1} parent=39 // pred_check_branch
          %248 = sbr.rel (%p246) target = $region52
        $region51: #{tpu_custom_call.1} parent=39 // pred_region
          %249 = dma.done [#allocation6], 4096
        $region52: #{tpu_custom_call.1} parent=39 // pred_fallthru
          _
        %s250 = sand.u32 %s31, 1
        %s251 = scalar_lea.sflag [#allocation3], %s250
        %s252 = sand.u32 %s31, 1
        %s253 = smul.addr %s252, 64
        %s254 = scalar_lea.vmem [#allocation2], %s253
        %p255 = pneg %p44
        %p256 = pneg %p41
        %p257 = pneg %p65
        %p258 = pneg %p62
        %p259 = pneg %p86
        %p260 = pneg %p83
        %p261 = pneg %p107
        %p262 = pneg %p104
        %p263 = pneg %p128
        %p264 = pneg %p125
        %p265 = pneg %p154
        %p266 = pneg %p151
        %s267 = sand.u32 %s141, 1
        %s268 = scalar_lea.sflag [#allocation4], %s267
        %s269 = sand.u32 %s141, 1
        %s270 = smul.addr %s269, 64
        %s271 = scalar_lea.vmem [#allocation8], %s270
        %s272 = smul.u32 8, %s23
        %s273 = smul.u32 8, %s23
        %v275 = vld [vmem:[%s237] sm:$0xff]
        %v276 = vld [vmem:[%s237 + $0x8] sm:$0xff]
        %v277 = vld [vmem:[%s237 + $0x10] sm:$0xff]
        %v278 = vld [vmem:[%s237 + $0x18] sm:$0xff]
        %v279 = vld [vmem:[%s237 + $0x20] sm:$0xff]
        %v280 = vld [vmem:[%s237 + $0x28] sm:$0xff]
        %v281 = vld [vmem:[%s237 + $0x30] sm:$0xff]
        %v282 = vld [vmem:[%s237 + $0x38] sm:$0xff]
        %v283 = vpack.c.bf16 %v276, %v275
        %v284 = vpack.c.bf16 %v278, %v277
        %v285 = vpack.c.bf16 %v280, %v279
        %v286 = vpack.c.bf16 %v282, %v281
        %v287 = vld [vmem:[#allocation5] sm:$0xff]
        %v288 = vld [vmem:[#allocation5 + $0x8] sm:$0xff]
        %v289 = vld [vmem:[#allocation5 + $0x10] sm:$0xff]
        %v290 = vld [vmem:[#allocation5 + $0x18] sm:$0xff]
        %v291 = vld [vmem:[#allocation5 + $0x20] sm:$0xff]
        %v292 = vld [vmem:[#allocation5 + $0x28] sm:$0xff]
        %v293 = vld [vmem:[#allocation5 + $0x30] sm:$0xff]
        %v294 = vld [vmem:[#allocation5 + $0x38] sm:$0xff]
        %v295 = vld [vmem:[#allocation5 + $0x40] sm:$0xff]
        %v296 = vld [vmem:[#allocation5 + $0x48] sm:$0xff]
        %v297 = vld [vmem:[#allocation5 + $0x50] sm:$0xff]
        %v298 = vld [vmem:[#allocation5 + $0x58] sm:$0xff]
        %v299 = vld [vmem:[#allocation5 + $0x60] sm:$0xff]
        %v300 = vld [vmem:[#allocation5 + $0x68] sm:$0xff]
        %v301 = vld [vmem:[#allocation5 + $0x70] sm:$0xff]
        %v302 = vld [vmem:[#allocation5 + $0x78] sm:$0xff]
        %v303 = vld [vmem:[#allocation5 + $0x80] sm:$0xff]
        %v304 = vld [vmem:[#allocation5 + $0x88] sm:$0xff]
        %v305 = vld [vmem:[#allocation5 + $0x90] sm:$0xff]
        %v306 = vld [vmem:[#allocation5 + $0x98] sm:$0xff]
        %v307 = vld [vmem:[#allocation5 + $0xa0] sm:$0xff]
        %v308 = vld [vmem:[#allocation5 + $0xa8] sm:$0xff]
        %v309 = vld [vmem:[#allocation5 + $0xb0] sm:$0xff]
        %v310 = vld [vmem:[#allocation5 + $0xb8] sm:$0xff]
        %v311 = vld [vmem:[#allocation5 + $0xc0] sm:$0xff]
        %v312 = vld [vmem:[#allocation5 + $0xc8] sm:$0xff]
        %v313 = vld [vmem:[#allocation5 + $0xd0] sm:$0xff]
        %v314 = vld [vmem:[#allocation5 + $0xd8] sm:$0xff]
        %v315 = vld [vmem:[#allocation5 + $0xe0] sm:$0xff]
        %v316 = vld [vmem:[#allocation5 + $0xe8] sm:$0xff]
        %v317 = vld [vmem:[#allocation5 + $0xf0] sm:$0xff]
        %v318 = vld [vmem:[#allocation5 + $0xf8] sm:$0xff]
        %v319 = vld [vmem:[%s2] sm:$0xf]
        %v321 = vlaneseq
        %v322 = vshrl.u32 %v321, 7
        %v323 = vsub.s32 0, %v322
        %v324 = vrot.slane %v319, %v323
        %v325 = vlaneseq
        %v326 = vshrl.u32 %v325, 7
        %v327 = vsub.s32 1, %v326
        %v328 = vrot.slane %v319, %v327
        %v329 = vlaneseq
        %v330 = vshrl.u32 %v329, 7
        %v331 = vsub.s32 2, %v330
        %v332 = vrot.slane %v319, %v331
        %v333 = vlaneseq
        %v334 = vshrl.u32 %v333, 7
        %v335 = vsub.s32 3, %v334
        %v336 = vrot.slane %v319, %v335
        %v373 = vunpack.c.l.b16 %v287
        %v374 = vunpack.c.h.b16 %v287
        %v375 = vunpack.c.l.b16 %v288
        %v376 = vunpack.c.h.b16 %v288
        %v377 = vunpack.c.l.b16 %v289
        %v378 = vunpack.c.h.b16 %v289
        %v379 = vunpack.c.l.b16 %v290
        %v380 = vunpack.c.h.b16 %v290
        %v381 = vunpack.c.l.b16 %v291
        %v382 = vunpack.c.h.b16 %v291
        %v383 = vunpack.c.l.b16 %v292
        %v384 = vunpack.c.h.b16 %v292
        %v385 = vunpack.c.l.b16 %v293
        %v386 = vunpack.c.h.b16 %v293
        %v387 = vunpack.c.l.b16 %v294
        %v388 = vunpack.c.h.b16 %v294
        %v389 = vunpack.c.l.b16 %v295
        %v390 = vunpack.c.h.b16 %v295
        %v391 = vunpack.c.l.b16 %v296
        %v392 = vunpack.c.h.b16 %v296
        %v393 = vunpack.c.l.b16 %v297
        %v394 = vunpack.c.h.b16 %v297
        %v395 = vunpack.c.l.b16 %v298
        %v396 = vunpack.c.h.b16 %v298
        %v397 = vunpack.c.l.b16 %v299
        %v398 = vunpack.c.h.b16 %v299
        %v399 = vunpack.c.l.b16 %v300
        %v400 = vunpack.c.h.b16 %v300
        %v401 = vunpack.c.l.b16 %v301
        %v402 = vunpack.c.h.b16 %v301
        %v403 = vunpack.c.l.b16 %v302
        %v404 = vunpack.c.h.b16 %v302
        %v405 = vunpack.c.l.b16 %v303
        %v406 = vunpack.c.h.b16 %v303
        %v407 = vunpack.c.l.b16 %v304
        %v408 = vunpack.c.h.b16 %v304
        %v409 = vunpack.c.l.b16 %v305
        %v410 = vunpack.c.h.b16 %v305
        %v411 = vunpack.c.l.b16 %v306
        %v412 = vunpack.c.h.b16 %v306
        %v413 = vunpack.c.l.b16 %v307
        %v414 = vunpack.c.h.b16 %v307
        %v415 = vunpack.c.l.b16 %v308
        %v416 = vunpack.c.h.b16 %v308
        %v417 = vunpack.c.l.b16 %v309
        %v418 = vunpack.c.h.b16 %v309
        %v419 = vunpack.c.l.b16 %v310
        %v420 = vunpack.c.h.b16 %v310
        %v421 = vunpack.c.l.b16 %v311
        %v422 = vunpack.c.h.b16 %v311
        %v423 = vunpack.c.l.b16 %v312
        %v424 = vunpack.c.h.b16 %v312
        %v425 = vunpack.c.l.b16 %v313
        %v426 = vunpack.c.h.b16 %v313
        %v427 = vunpack.c.l.b16 %v314
        %v428 = vunpack.c.h.b16 %v314
        %v429 = vunpack.c.l.b16 %v315
        %v430 = vunpack.c.h.b16 %v315
        %v431 = vunpack.c.l.b16 %v316
        %v432 = vunpack.c.h.b16 %v316
        %v433 = vunpack.c.l.b16 %v317
        %v434 = vunpack.c.h.b16 %v317
        %v435 = vunpack.c.l.b16 %v318
        %v436 = vunpack.c.h.b16 %v318
        %v437 = vpack.c.b16 %v377, %v373
        %v438 = vpack.c.b16 %v378, %v374
        %v439 = vpack.c.b16 %v379, %v375
        %v440 = vpack.c.b16 %v380, %v376
        %v441 = vpack.c.b16 %v385, %v381
        %v442 = vpack.c.b16 %v386, %v382
        %v443 = vpack.c.b16 %v387, %v383
        %v444 = vpack.c.b16 %v388, %v384
        %v445 = vpack.c.b16 %v393, %v389
        %v446 = vpack.c.b16 %v394, %v390
        %v447 = vpack.c.b16 %v395, %v391
        %v448 = vpack.c.b16 %v396, %v392
        %v449 = vpack.c.b16 %v401, %v397
        %v450 = vpack.c.b16 %v402, %v398
        %v451 = vpack.c.b16 %v403, %v399
        %v452 = vpack.c.b16 %v404, %v400
        %v453 = vpack.c.b16 %v409, %v405
        %v454 = vpack.c.b16 %v410, %v406
        %v455 = vpack.c.b16 %v411, %v407
        %v456 = vpack.c.b16 %v412, %v408
        %v457 = vpack.c.b16 %v417, %v413
        %v458 = vpack.c.b16 %v418, %v414
        %v459 = vpack.c.b16 %v419, %v415
        %v460 = vpack.c.b16 %v420, %v416
        %v461 = vpack.c.b16 %v425, %v421
        %v462 = vpack.c.b16 %v426, %v422
        %v463 = vpack.c.b16 %v427, %v423
        %v464 = vpack.c.b16 %v428, %v424
        %v465 = vpack.c.b16 %v433, %v429
        %v466 = vpack.c.b16 %v434, %v430
        %v467 = vpack.c.b16 %v435, %v431
        %v468 = vpack.c.b16 %v436, %v432
        %501 = vmatprep.subr.bf16.mxu0 %v438
        %502 = vmatpush1.bf16.msra.mxu0 %v437
        %503 = vmatprep.subr.bf16.mxu0 %v442
        %504 = vmatpush1.bf16.msra.mxu0 %v441
        %505 = vmatprep.subr.bf16.mxu0 %v446
        %506 = vmatpush1.bf16.msra.mxu0 %v445
        %507 = vmatprep.subr.bf16.mxu0 %v450
        %508 = vmatpush1.bf16.msra.mxu0 %v449
        %509 = vmatprep.subr.bf16.mxu0 %v454
        %510 = vmatpush1.bf16.msra.mxu0 %v453
        %511 = vmatprep.subr.bf16.mxu0 %v458
        %512 = vmatpush1.bf16.msra.mxu0 %v457
        %513 = vmatprep.subr.bf16.mxu0 %v462
        %514 = vmatpush1.bf16.msra.mxu0 %v461
        %515 = vmatprep.subr.bf16.mxu0 %v466
        %516 = vmatpush1.bf16.msra.mxu0 %v465
        %517 = vmatprep.subr.bf16.mxu0 0
        %518 = vmatpush1.bf16.msra.mxu0 0
        %519 = vmatprep.subr.bf16.mxu0 0
        %520 = vmatpush1.bf16.msra.mxu0 0
        %521 = vmatprep.subr.bf16.mxu0 0
        %522 = vmatpush1.bf16.msra.mxu0 0
        %523 = vmatprep.subr.bf16.mxu0 0
        %524 = vmatpush1.bf16.msra.mxu0 0
        %525 = vmatprep.subr.bf16.mxu0 0
        %526 = vmatpush1.bf16.msra.mxu0 0
        %527 = vmatprep.subr.bf16.mxu0 0
        %528 = vmatpush1.bf16.msra.mxu0 0
        %529 = vmatprep.subr.bf16.mxu0 0
        %530 = vmatpush1.bf16.msra.mxu0 0
        %531 = vmatprep.subr.bf16.mxu0 0
        %532 = vmatpush1.bf16.msra.mxu0 0
        %533 = vmatprep.mubr.bf16.mxu0 0
        %534 = vmatmul.mubr.bf16.gmra.mrb[0].mxu0 %v283
        %v535 = vpop.f32.mrb[0].mxu0
        %v536 = vadd.f32 %v324, %v535
        %v537 = vpop.f32.mrb[0].mxu0
        %v538 = vadd.f32 %v328, %v537
        %v539 = vpop.f32.mrb[0].mxu0
        %v540 = vadd.f32 %v324, %v539
        %v541 = vpop.f32.mrb[0].mxu0
        %v542 = vadd.f32 %v328, %v541
        %543 = vmatprep.mubr.bf16.mxu0 0
        %544 = vmatmul.mubr.bf16.gmra.mrb[0].mxu0 %v284
        %v545 = vpop.f32.mrb[0].mxu0
        %v546 = vadd.f32 %v324, %v545
        %v547 = vpop.f32.mrb[0].mxu0
        %v548 = vadd.f32 %v328, %v547
        %v549 = vpop.f32.mrb[0].mxu0
        %v550 = vadd.f32 %v324, %v549
        %v551 = vpop.f32.mrb[0].mxu0
        %v552 = vadd.f32 %v328, %v551
        %553 = vmatprep.mubr.bf16.mxu0 0
        %554 = vmatmul.mubr.bf16.gmra.mrb[0].mxu0 %v285
        %v555 = vpop.f32.mrb[0].mxu0
        %v556 = vadd.f32 %v324, %v555
        %v557 = vpop.f32.mrb[0].mxu0
        %v558 = vadd.f32 %v328, %v557
        %v559 = vpop.f32.mrb[0].mxu0
        %v560 = vadd.f32 %v324, %v559
        %v561 = vpop.f32.mrb[0].mxu0
        %v562 = vadd.f32 %v328, %v561
        %563 = vmatprep.mubr.bf16.mxu0 0
        %564 = vmatmul.mubr.bf16.gmra.mrb[0].mxu0 %v286
        %v565 = vpop.f32.mrb[0].mxu0
        %v566 = vadd.f32 %v324, %v565
        %v567 = vpop.f32.mrb[0].mxu0
        %v568 = vadd.f32 %v328, %v567
        %v569 = vpop.f32.mrb[0].mxu0
        %v570 = vadd.f32 %v324, %v569
        %v571 = vpop.f32.mrb[0].mxu0
        %v572 = vadd.f32 %v328, %v571
        %573 = vdwg.mxu0
        %574 = vmatprep.subr.bf16.mxu0 %v440
        %575 = vmatpush1.bf16.msra.mxu0 %v439
        %576 = vmatprep.subr.bf16.mxu0 %v444
        %577 = vmatpush1.bf16.msra.mxu0 %v443
        %578 = vmatprep.subr.bf16.mxu0 %v448
        %579 = vmatpush1.bf16.msra.mxu0 %v447
        %580 = vmatprep.subr.bf16.mxu0 %v452
        %581 = vmatpush1.bf16.msra.mxu0 %v451
        %582 = vmatprep.subr.bf16.mxu0 %v456
        %583 = vmatpush1.bf16.msra.mxu0 %v455
        %584 = vmatprep.subr.bf16.mxu0 %v460
        %585 = vmatpush1.bf16.msra.mxu0 %v459
        %586 = vmatprep.subr.bf16.mxu0 %v464
        %587 = vmatpush1.bf16.msra.mxu0 %v463
        %588 = vmatprep.subr.bf16.mxu0 %v468
        %589 = vmatpush1.bf16.msra.mxu0 %v467
        %590 = vmatprep.subr.bf16.mxu0 0
        %591 = vmatpush1.bf16.msra.mxu0 0
        %592 = vmatprep.subr.bf16.mxu0 0
        %593 = vmatpush1.bf16.msra.mxu0 0
        %594 = vmatprep.subr.bf16.mxu0 0
        %595 = vmatpush1.bf16.msra.mxu0 0
        %596 = vmatprep.subr.bf16.mxu0 0
        %597 = vmatpush1.bf16.msra.mxu0 0
        %598 = vmatprep.subr.bf16.mxu0 0
        %599 = vmatpush1.bf16.msra.mxu0 0
        %600 = vmatprep.subr.bf16.mxu0 0
        %601 = vmatpush1.bf16.msra.mxu0 0
        %602 = vmatprep.subr.bf16.mxu0 0
        %603 = vmatpush1.bf16.msra.mxu0 0
        %604 = vmatprep.subr.bf16.mxu0 0
        %605 = vmatpush1.bf16.msra.mxu0 0
        %606 = vmatprep.mubr.bf16.mxu0 0
        %607 = vmatmul.mubr.bf16.gmra.mrb[0].mxu0 %v283
        %v608 = vpop.f32.mrb[0].mxu0
        %v609 = vadd.f32 %v332, %v608
        %v610 = vpop.f32.mrb[0].mxu0
        %v611 = vadd.f32 %v336, %v610
        %v612 = vpop.f32.mrb[0].mxu0
        %v613 = vadd.f32 %v332, %v612
        %v614 = vpop.f32.mrb[0].mxu0
        %v615 = vadd.f32 %v336, %v614
        %616 = vmatprep.mubr.bf16.mxu0 0
        %617 = vmatmul.mubr.bf16.gmra.mrb[0].mxu0 %v284
        %v618 = vpop.f32.mrb[0].mxu0
        %v619 = vadd.f32 %v332, %v618
        %v620 = vpop.f32.mrb[0].mxu0
        %v621 = vadd.f32 %v336, %v620
        %v622 = vpop.f32.mrb[0].mxu0
        %v623 = vadd.f32 %v332, %v622
        %v624 = vpop.f32.mrb[0].mxu0
        %v625 = vadd.f32 %v336, %v624
        %626 = vmatprep.mubr.bf16.mxu0 0
        %627 = vmatmul.mubr.bf16.gmra.mrb[0].mxu0 %v285
        %v628 = vpop.f32.mrb[0].mxu0
        %v629 = vadd.f32 %v332, %v628
        %v630 = vpop.f32.mrb[0].mxu0
        %v631 = vadd.f32 %v336, %v630
        %v632 = vpop.f32.mrb[0].mxu0
        %v633 = vadd.f32 %v332, %v632
        %v634 = vpop.f32.mrb[0].mxu0
        %v635 = vadd.f32 %v336, %v634
        %636 = vmatprep.mubr.bf16.mxu0 0
        %637 = vmatmul.mubr.bf16.gmra.mrb[0].mxu0 %v286
        %v638 = vpop.f32.mrb[0].mxu0
        %v639 = vadd.f32 %v332, %v638
        %v640 = vpop.f32.mrb[0].mxu0
        %v641 = vadd.f32 %v336, %v640
        %v642 = vpop.f32.mrb[0].mxu0
        %v643 = vadd.f32 %v332, %v642
        %v644 = vpop.f32.mrb[0].mxu0
        %v645 = vadd.f32 %v336, %v644
        %646 = vdwg.mxu0
        %v647 = vmul.f32 %v536, 0.7978846
        %v648 = vmul.f32 %v538, 0.7978846
        %v649 = vmul.f32 %v609, 0.7978846
        %v650 = vmul.f32 %v611, 0.7978846
        %v651 = vmul.f32 %v540, 0.7978846
        %v652 = vmul.f32 %v542, 0.7978846
        %v653 = vmul.f32 %v613, 0.7978846
        %v654 = vmul.f32 %v615, 0.7978846
        %v655 = vmul.f32 %v546, 0.7978846
        %v656 = vmul.f32 %v548, 0.7978846
        %v657 = vmul.f32 %v619, 0.7978846
        %v658 = vmul.f32 %v621, 0.7978846
        %v659 = vmul.f32 %v550, 0.7978846
        %v660 = vmul.f32 %v552, 0.7978846
        %v661 = vmul.f32 %v623, 0.7978846
        %v662 = vmul.f32 %v625, 0.7978846
        %v663 = vmul.f32 %v556, 0.7978846
        %v664 = vmul.f32 %v558, 0.7978846
        %v665 = vmul.f32 %v629, 0.7978846
        %v666 = vmul.f32 %v631, 0.7978846
        %v667 = vmul.f32 %v560, 0.7978846
        %v668 = vmul.f32 %v562, 0.7978846
        %v669 = vmul.f32 %v633, 0.7978846
        %v670 = vmul.f32 %v635, 0.7978846
        %v671 = vmul.f32 %v566, 0.7978846
        %v672 = vmul.f32 %v568, 0.7978846
        %v673 = vmul.f32 %v639, 0.7978846
        %v674 = vmul.f32 %v641, 0.7978846
        %v675 = vmul.f32 %v570, 0.7978846
        %v676 = vmul.f32 %v572, 0.7978846
        %v677 = vmul.f32 %v643, 0.7978846
        %v678 = vmul.f32 %v645, 0.7978846
        %v679 = vmul.f32 %v536, %v536
        %v680 = vmul.f32 %v538, %v538
        %v681 = vmul.f32 %v609, %v609
        %v682 = vmul.f32 %v611, %v611
        %v683 = vmul.f32 %v540, %v540
        %v684 = vmul.f32 %v542, %v542
        %v685 = vmul.f32 %v613, %v613
        %v686 = vmul.f32 %v615, %v615
        %v687 = vmul.f32 %v546, %v546
        %v688 = vmul.f32 %v548, %v548
        %v689 = vmul.f32 %v619, %v619
        %v690 = vmul.f32 %v621, %v621
        %v691 = vmul.f32 %v550, %v550
        %v692 = vmul.f32 %v552, %v552
        %v693 = vmul.f32 %v623, %v623
        %v694 = vmul.f32 %v625, %v625
        %v695 = vmul.f32 %v556, %v556
        %v696 = vmul.f32 %v558, %v558
        %v697 = vmul.f32 %v629, %v629
        %v698 = vmul.f32 %v631, %v631
        %v699 = vmul.f32 %v560, %v560
        %v700 = vmul.f32 %v562, %v562
        %v701 = vmul.f32 %v633, %v633
        %v702 = vmul.f32 %v635, %v635
        %v703 = vmul.f32 %v566, %v566
        %v704 = vmul.f32 %v568, %v568
        %v705 = vmul.f32 %v639, %v639
        %v706 = vmul.f32 %v641, %v641
        %v707 = vmul.f32 %v570, %v570
        %v708 = vmul.f32 %v572, %v572
        %v709 = vmul.f32 %v643, %v643
        %v710 = vmul.f32 %v645, %v645
        %v711 = vmul.f32 %v679, 0.044715
        %v712 = vmul.f32 %v680, 0.044715
        %v713 = vmul.f32 %v681, 0.044715
        %v714 = vmul.f32 %v682, 0.044715
        %v715 = vmul.f32 %v683, 0.044715
        %v716 = vmul.f32 %v684, 0.044715
        %v717 = vmul.f32 %v685, 0.044715
        %v718 = vmul.f32 %v686, 0.044715
        %v719 = vmul.f32 %v687, 0.044715
        %v720 = vmul.f32 %v688, 0.044715
        %v721 = vmul.f32 %v689, 0.044715
        %v722 = vmul.f32 %v690, 0.044715
        %v723 = vmul.f32 %v691, 0.044715
        %v724 = vmul.f32 %v692, 0.044715
        %v725 = vmul.f32 %v693, 0.044715
        %v726 = vmul.f32 %v694, 0.044715
        %v727 = vmul.f32 %v695, 0.044715
        %v728 = vmul.f32 %v696, 0.044715
        %v729 = vmul.f32 %v697, 0.044715
        %v730 = vmul.f32 %v698, 0.044715
        %v731 = vmul.f32 %v699, 0.044715
        %v732 = vmul.f32 %v700, 0.044715
        %v733 = vmul.f32 %v701, 0.044715
        %v734 = vmul.f32 %v702, 0.044715
        %v735 = vmul.f32 %v703, 0.044715
        %v736 = vmul.f32 %v704, 0.044715
        %v737 = vmul.f32 %v705, 0.044715
        %v738 = vmul.f32 %v706, 0.044715
        %v739 = vmul.f32 %v707, 0.044715
        %v740 = vmul.f32 %v708, 0.044715
        %v741 = vmul.f32 %v709, 0.044715
        %v742 = vmul.f32 %v710, 0.044715
        %v743 = vadd.f32 %v711, 1.0
        %v744 = vadd.f32 %v712, 1.0
        %v745 = vadd.f32 %v713, 1.0
        %v746 = vadd.f32 %v714, 1.0
        %v747 = vadd.f32 %v715, 1.0
        %v748 = vadd.f32 %v716, 1.0
        %v749 = vadd.f32 %v717, 1.0
        %v750 = vadd.f32 %v718, 1.0
        %v751 = vadd.f32 %v719, 1.0
        %v752 = vadd.f32 %v720, 1.0
        %v753 = vadd.f32 %v721, 1.0
        %v754 = vadd.f32 %v722, 1.0
        %v755 = vadd.f32 %v723, 1.0
        %v756 = vadd.f32 %v724, 1.0
        %v757 = vadd.f32 %v725, 1.0
        %v758 = vadd.f32 %v726, 1.0
        %v759 = vadd.f32 %v727, 1.0
        %v760 = vadd.f32 %v728, 1.0
        %v761 = vadd.f32 %v729, 1.0
        %v762 = vadd.f32 %v730, 1.0
        %v763 = vadd.f32 %v731, 1.0
        %v764 = vadd.f32 %v732, 1.0
        %v765 = vadd.f32 %v733, 1.0
        %v766 = vadd.f32 %v734, 1.0
        %v767 = vadd.f32 %v735, 1.0
        %v768 = vadd.f32 %v736, 1.0
        %v769 = vadd.f32 %v737, 1.0
        %v770 = vadd.f32 %v738, 1.0
        %v771 = vadd.f32 %v739, 1.0
        %v772 = vadd.f32 %v740, 1.0
        %v773 = vadd.f32 %v741, 1.0
        %v774 = vadd.f32 %v742, 1.0
        %v775 = vmul.f32 %v647, %v743
        %v776 = vmul.f32 %v648, %v744
        %v777 = vmul.f32 %v649, %v745
        %v778 = vmul.f32 %v650, %v746
        %v779 = vmul.f32 %v651, %v747
        %v780 = vmul.f32 %v652, %v748
        %v781 = vmul.f32 %v653, %v749
        %v782 = vmul.f32 %v654, %v750
        %v783 = vmul.f32 %v655, %v751
        %v784 = vmul.f32 %v656, %v752
        %v785 = vmul.f32 %v657, %v753
        %v786 = vmul.f32 %v658, %v754
        %v787 = vmul.f32 %v659, %v755
        %v788 = vmul.f32 %v660, %v756
        %v789 = vmul.f32 %v661, %v757
        %v790 = vmul.f32 %v662, %v758
        %v791 = vmul.f32 %v663, %v759
        %v792 = vmul.f32 %v664, %v760
        %v793 = vmul.f32 %v665, %v761
        %v794 = vmul.f32 %v666, %v762
        %v795 = vmul.f32 %v667, %v763
        %v796 = vmul.f32 %v668, %v764
        %v797 = vmul.f32 %v669, %v765
        %v798 = vmul.f32 %v670, %v766
        %v799 = vmul.f32 %v671, %v767
        %v800 = vmul.f32 %v672, %v768
        %v801 = vmul.f32 %v673, %v769
        %v802 = vmul.f32 %v674, %v770
        %v803 = vmul.f32 %v675, %v771
        %v804 = vmul.f32 %v676, %v772
        %v805 = vmul.f32 %v677, %v773
        %v806 = vmul.f32 %v678, %v774
        %v807 = vmul.f32 %v536, 0.5
        %v808 = vmul.f32 %v538, 0.5
        %v809 = vmul.f32 %v609, 0.5
        %v810 = vmul.f32 %v611, 0.5
        %v811 = vmul.f32 %v540, 0.5
        %v812 = vmul.f32 %v542, 0.5
        %v813 = vmul.f32 %v613, 0.5
        %v814 = vmul.f32 %v615, 0.5
        %v815 = vmul.f32 %v546, 0.5
        %v816 = vmul.f32 %v548, 0.5
        %v817 = vmul.f32 %v619, 0.5
        %v818 = vmul.f32 %v621, 0.5
        %v819 = vmul.f32 %v550, 0.5
        %v820 = vmul.f32 %v552, 0.5
        %v821 = vmul.f32 %v623, 0.5
        %v822 = vmul.f32 %v625, 0.5
        %v823 = vmul.f32 %v556, 0.5
        %v824 = vmul.f32 %v558, 0.5
        %v825 = vmul.f32 %v629, 0.5
        %v826 = vmul.f32 %v631, 0.5
        %v827 = vmul.f32 %v560, 0.5
        %v828 = vmul.f32 %v562, 0.5
        %v829 = vmul.f32 %v633, 0.5
        %v830 = vmul.f32 %v635, 0.5
        %v831 = vmul.f32 %v566, 0.5
        %v832 = vmul.f32 %v568, 0.5
        %v833 = vmul.f32 %v639, 0.5
        %v834 = vmul.f32 %v641, 0.5
        %v835 = vmul.f32 %v570, 0.5
        %v836 = vmul.f32 %v572, 0.5
        %v837 = vmul.f32 %v643, 0.5
        %v838 = vmul.f32 %v645, 0.5
        %v839 = vtanh.pop %v775
        %v840 = vtanh.pop %v776
        %v841 = vtanh.pop %v777
        %v842 = vtanh.pop %v778
        %v843 = vtanh.pop %v779
        %v844 = vtanh.pop %v780
        %v845 = vtanh.pop %v781
        %v846 = vtanh.pop %v782
        %v847 = vtanh.pop %v783
        %v848 = vtanh.pop %v784
        %v849 = vtanh.pop %v785
        %v850 = vtanh.pop %v786
        %v851 = vtanh.pop %v787
        %v852 = vtanh.pop %v788
        %v853 = vtanh.pop %v789
        %v854 = vtanh.pop %v790
        %v855 = vtanh.pop %v791
        %v856 = vtanh.pop %v792
        %v857 = vtanh.pop %v793
        %v858 = vtanh.pop %v794
        %v859 = vtanh.pop %v795
        %v860 = vtanh.pop %v796
        %v861 = vtanh.pop %v797
        %v862 = vtanh.pop %v798
        %v863 = vtanh.pop %v799
        %v864 = vtanh.pop %v800
        %v865 = vtanh.pop %v801
        %v866 = vtanh.pop %v802
        %v867 = vtanh.pop %v803
        %v868 = vtanh.pop %v804
        %v869 = vtanh.pop %v805
        %v870 = vtanh.pop %v806
        %v871 = vadd.f32 %v839, 1.0
        %v872 = vadd.f32 %v840, 1.0
        %v873 = vadd.f32 %v841, 1.0
        %v874 = vadd.f32 %v842, 1.0
        %v875 = vadd.f32 %v843, 1.0
        %v876 = vadd.f32 %v844, 1.0
        %v877 = vadd.f32 %v845, 1.0
        %v878 = vadd.f32 %v846, 1.0
        %v879 = vadd.f32 %v847, 1.0
        %v880 = vadd.f32 %v848, 1.0
        %v881 = vadd.f32 %v849, 1.0
        %v882 = vadd.f32 %v850, 1.0
        %v883 = vadd.f32 %v851, 1.0
        %v884 = vadd.f32 %v852, 1.0
        %v885 = vadd.f32 %v853, 1.0
        %v886 = vadd.f32 %v854, 1.0
        %v887 = vadd.f32 %v855, 1.0
        %v888 = vadd.f32 %v856, 1.0
        %v889 = vadd.f32 %v857, 1.0
        %v890 = vadd.f32 %v858, 1.0
        %v891 = vadd.f32 %v859, 1.0
        %v892 = vadd.f32 %v860, 1.0
        %v893 = vadd.f32 %v861, 1.0
        %v894 = vadd.f32 %v862, 1.0
        %v895 = vadd.f32 %v863, 1.0
        %v896 = vadd.f32 %v864, 1.0
        %v897 = vadd.f32 %v865, 1.0
        %v898 = vadd.f32 %v866, 1.0
        %v899 = vadd.f32 %v867, 1.0
        %v900 = vadd.f32 %v868, 1.0
        %v901 = vadd.f32 %v869, 1.0
        %v902 = vadd.f32 %v870, 1.0
        %v903 = vmul.f32 %v807, %v871
        %v904 = vmul.f32 %v808, %v872
        %v905 = vmul.f32 %v809, %v873
        %v906 = vmul.f32 %v810, %v874
        %v907 = vmul.f32 %v811, %v875
        %v908 = vmul.f32 %v812, %v876
        %v909 = vmul.f32 %v813, %v877
        %v910 = vmul.f32 %v814, %v878
        %v911 = vmul.f32 %v815, %v879
        %v912 = vmul.f32 %v816, %v880
        %v913 = vmul.f32 %v817, %v881
        %v914 = vmul.f32 %v818, %v882
        %v915 = vmul.f32 %v819, %v883
        %v916 = vmul.f32 %v820, %v884
        %v917 = vmul.f32 %v821, %v885
        %v918 = vmul.f32 %v822, %v886
        %v919 = vmul.f32 %v823, %v887
        %v920 = vmul.f32 %v824, %v888
        %v921 = vmul.f32 %v825, %v889
        %v922 = vmul.f32 %v826, %v890
        %v923 = vmul.f32 %v827, %v891
        %v924 = vmul.f32 %v828, %v892
        %v925 = vmul.f32 %v829, %v893
        %v926 = vmul.f32 %v830, %v894
        %v927 = vmul.f32 %v831, %v895
        %v928 = vmul.f32 %v832, %v896
        %v929 = vmul.f32 %v833, %v897
        %v930 = vmul.f32 %v834, %v898
        %v931 = vmul.f32 %v835, %v899
        %v932 = vmul.f32 %v836, %v900
        %v933 = vmul.f32 %v837, %v901
        %v934 = vmul.f32 %v838, %v902
        %v935 = vpack.c.bf16 %v907, %v903
        %v936 = vpack.c.bf16 %v908, %v904
        %v937 = vpack.c.bf16 %v909, %v905
        %v938 = vpack.c.bf16 %v910, %v906
        %v939 = vpack.c.bf16 %v915, %v911
        %v940 = vpack.c.bf16 %v916, %v912
        %v941 = vpack.c.bf16 %v917, %v913
        %v942 = vpack.c.bf16 %v918, %v914
        %v943 = vpack.c.bf16 %v923, %v919
        %v944 = vpack.c.bf16 %v924, %v920
        %v945 = vpack.c.bf16 %v925, %v921
        %v946 = vpack.c.bf16 %v926, %v922
        %v947 = vpack.c.bf16 %v931, %v927
        %v948 = vpack.c.bf16 %v932, %v928
        %v949 = vpack.c.bf16 %v933, %v929
        %v950 = vpack.c.bf16 %v934, %v930
        %v951 = vld [vmem:[#allocation7] sm:$0xf]
        %v952 = vld [vmem:[#allocation7 + $0x4] sm:$0xf]
        %v953 = vld [vmem:[#allocation7 + $0x8] sm:$0xf]
        %v954 = vld [vmem:[#allocation7 + $0xc] sm:$0xf]
        %v955 = vld [vmem:[#allocation7 + $0x10] sm:$0xf]
        %v956 = vld [vmem:[#allocation7 + $0x14] sm:$0xf]
        %v957 = vld [vmem:[#allocation7 + $0x18] sm:$0xf]
        %v958 = vld [vmem:[#allocation7 + $0x1c] sm:$0xf]
        %v959 = vld [vmem:[#allocation7 + $0x20] sm:$0xf]
        %v960 = vld [vmem:[#allocation7 + $0x24] sm:$0xf]
        %v961 = vld [vmem:[#allocation7 + $0x28] sm:$0xf]
        %v962 = vld [vmem:[#allocation7 + $0x2c] sm:$0xf]
        %v963 = vld [vmem:[#allocation7 + $0x30] sm:$0xf]
        %v964 = vld [vmem:[#allocation7 + $0x34] sm:$0xf]
        %v965 = vld [vmem:[#allocation7 + $0x38] sm:$0xf]
        %v966 = vld [vmem:[#allocation7 + $0x3c] sm:$0xf]
        %v967 = vld [vmem:[#allocation7 + $0x40] sm:$0xf]
        %v968 = vld [vmem:[#allocation7 + $0x44] sm:$0xf]
        %v969 = vld [vmem:[#allocation7 + $0x48] sm:$0xf]
        %v970 = vld [vmem:[#allocation7 + $0x4c] sm:$0xf]
        %v971 = vld [vmem:[#allocation7 + $0x50] sm:$0xf]
        %v972 = vld [vmem:[#allocation7 + $0x54] sm:$0xf]
        %v973 = vld [vmem:[#allocation7 + $0x58] sm:$0xf]
        %v974 = vld [vmem:[#allocation7 + $0x5c] sm:$0xf]
        %v975 = vld [vmem:[#allocation7 + $0x60] sm:$0xf]
        %v976 = vld [vmem:[#allocation7 + $0x64] sm:$0xf]
        %v977 = vld [vmem:[#allocation7 + $0x68] sm:$0xf]
        %v978 = vld [vmem:[#allocation7 + $0x6c] sm:$0xf]
        %v979 = vld [vmem:[#allocation7 + $0x70] sm:$0xf]
        %v980 = vld [vmem:[#allocation7 + $0x74] sm:$0xf]
        %v981 = vld [vmem:[#allocation7 + $0x78] sm:$0xf]
        %v982 = vld [vmem:[#allocation7 + $0x7c] sm:$0xf]
        %v983 = vld [vmem:[#allocation7 + $0x80] sm:$0xf]
        %v984 = vld [vmem:[#allocation7 + $0x84] sm:$0xf]
        %v985 = vld [vmem:[#allocation7 + $0x88] sm:$0xf]
        %v986 = vld [vmem:[#allocation7 + $0x8c] sm:$0xf]
        %v987 = vld [vmem:[#allocation7 + $0x90] sm:$0xf]
        %v988 = vld [vmem:[#allocation7 + $0x94] sm:$0xf]
        %v989 = vld [vmem:[#allocation7 + $0x98] sm:$0xf]
        %v990 = vld [vmem:[#allocation7 + $0x9c] sm:$0xf]
        %v991 = vld [vmem:[#allocation7 + $0xa0] sm:$0xf]
        %v992 = vld [vmem:[#allocation7 + $0xa4] sm:$0xf]
        %v993 = vld [vmem:[#allocation7 + $0xa8] sm:$0xf]
        %v994 = vld [vmem:[#allocation7 + $0xac] sm:$0xf]
        %v995 = vld [vmem:[#allocation7 + $0xb0] sm:$0xf]
        %v996 = vld [vmem:[#allocation7 + $0xb4] sm:$0xf]
        %v997 = vld [vmem:[#allocation7 + $0xb8] sm:$0xf]
        %v998 = vld [vmem:[#allocation7 + $0xbc] sm:$0xf]
        %v999 = vld [vmem:[#allocation7 + $0xc0] sm:$0xf]
        %v1000 = vld [vmem:[#allocation7 + $0xc4] sm:$0xf]
        %v1001 = vld [vmem:[#allocation7 + $0xc8] sm:$0xf]
        %v1002 = vld [vmem:[#allocation7 + $0xcc] sm:$0xf]
        %v1003 = vld [vmem:[#allocation7 + $0xd0] sm:$0xf]
        %v1004 = vld [vmem:[#allocation7 + $0xd4] sm:$0xf]
        %v1005 = vld [vmem:[#allocation7 + $0xd8] sm:$0xf]
        %v1006 = vld [vmem:[#allocation7 + $0xdc] sm:$0xf]
        %v1007 = vld [vmem:[#allocation7 + $0xe0] sm:$0xf]
        %v1008 = vld [vmem:[#allocation7 + $0xe4] sm:$0xf]
        %v1009 = vld [vmem:[#allocation7 + $0xe8] sm:$0xf]
        %v1010 = vld [vmem:[#allocation7 + $0xec] sm:$0xf]
        %v1011 = vld [vmem:[#allocation7 + $0xf0] sm:$0xf]
        %v1012 = vld [vmem:[#allocation7 + $0xf4] sm:$0xf]
        %v1013 = vld [vmem:[#allocation7 + $0xf8] sm:$0xf]
        %v1014 = vld [vmem:[#allocation7 + $0xfc] sm:$0xf]
        %v1015 = vld [vmem:[%s4] sm:$0x1]
        %v1017 = vlaneseq
        %v1018 = vshrl.u32 %v1017, 7
        %v1019 = vsub.s32 0, %v1018
        %v1020 = vrot.slane %v1015, %v1019
        %v1086 = vunpack.c.l.b16 %v951
        %v1087 = vunpack.c.l.b16 %v952
        %v1088 = vunpack.c.l.b16 %v953
        %v1089 = vunpack.c.l.b16 %v954
        %v1090 = vunpack.c.l.b16 %v955
        %v1091 = vunpack.c.l.b16 %v956
        %v1092 = vunpack.c.l.b16 %v957
        %v1093 = vunpack.c.l.b16 %v958
        %v1094 = vunpack.c.l.b16 %v959
        %v1095 = vunpack.c.l.b16 %v960
        %v1096 = vunpack.c.l.b16 %v961
        %v1097 = vunpack.c.l.b16 %v962
        %v1098 = vunpack.c.l.b16 %v963
        %v1099 = vunpack.c.l.b16 %v964
        %v1100 = vunpack.c.l.b16 %v965
        %v1101 = vunpack.c.l.b16 %v966
        %v1102 = vunpack.c.l.b16 %v967
        %v1103 = vunpack.c.l.b16 %v968
        %v1104 = vunpack.c.l.b16 %v969
        %v1105 = vunpack.c.l.b16 %v970
        %v1106 = vunpack.c.l.b16 %v971
        %v1107 = vunpack.c.l.b16 %v972
        %v1108 = vunpack.c.l.b16 %v973
        %v1109 = vunpack.c.l.b16 %v974
        %v1110 = vunpack.c.l.b16 %v975
        %v1111 = vunpack.c.l.b16 %v976
        %v1112 = vunpack.c.l.b16 %v977
        %v1113 = vunpack.c.l.b16 %v978
        %v1114 = vunpack.c.l.b16 %v979
        %v1115 = vunpack.c.l.b16 %v980
        %v1116 = vunpack.c.l.b16 %v981
        %v1117 = vunpack.c.l.b16 %v982
        %v1118 = vunpack.c.l.b16 %v983
        %v1119 = vunpack.c.l.b16 %v984
        %v1120 = vunpack.c.l.b16 %v985
        %v1121 = vunpack.c.l.b16 %v986
        %v1122 = vunpack.c.l.b16 %v987
        %v1123 = vunpack.c.l.b16 %v988
        %v1124 = vunpack.c.l.b16 %v989
        %v1125 = vunpack.c.l.b16 %v990
        %v1126 = vunpack.c.l.b16 %v991
        %v1127 = vunpack.c.l.b16 %v992
        %v1128 = vunpack.c.l.b16 %v993
        %v1129 = vunpack.c.l.b16 %v994
        %v1130 = vunpack.c.l.b16 %v995
        %v1131 = vunpack.c.l.b16 %v996
        %v1132 = vunpack.c.l.b16 %v997
        %v1133 = vunpack.c.l.b16 %v998
        %v1134 = vunpack.c.l.b16 %v999
        %v1135 = vunpack.c.l.b16 %v1000
        %v1136 = vunpack.c.l.b16 %v1001
        %v1137 = vunpack.c.l.b16 %v1002
        %v1138 = vunpack.c.l.b16 %v1003
        %v1139 = vunpack.c.l.b16 %v1004
        %v1140 = vunpack.c.l.b16 %v1005
        %v1141 = vunpack.c.l.b16 %v1006
        %v1142 = vunpack.c.l.b16 %v1007
        %v1143 = vunpack.c.l.b16 %v1008
        %v1144 = vunpack.c.l.b16 %v1009
        %v1145 = vunpack.c.l.b16 %v1010
        %v1146 = vunpack.c.l.b16 %v1011
        %v1147 = vunpack.c.l.b16 %v1012
        %v1148 = vunpack.c.l.b16 %v1013
        %v1149 = vunpack.c.l.b16 %v1014
        %v1150 = vpack.c.b16 %v1087, %v1086
        %v1151 = vpack.c.b16 %v1089, %v1088
        %v1152 = vpack.c.b16 %v1091, %v1090
        %v1153 = vpack.c.b16 %v1093, %v1092
        %v1154 = vpack.c.b16 %v1095, %v1094
        %v1155 = vpack.c.b16 %v1097, %v1096
        %v1156 = vpack.c.b16 %v1099, %v1098
        %v1157 = vpack.c.b16 %v1101, %v1100
        %v1158 = vpack.c.b16 %v1103, %v1102
        %v1159 = vpack.c.b16 %v1105, %v1104
        %v1160 = vpack.c.b16 %v1107, %v1106
        %v1161 = vpack.c.b16 %v1109, %v1108
        %v1162 = vpack.c.b16 %v1111, %v1110
        %v1163 = vpack.c.b16 %v1113, %v1112
        %v1164 = vpack.c.b16 %v1115, %v1114
        %v1165 = vpack.c.b16 %v1117, %v1116
        %v1166 = vpack.c.b16 %v1119, %v1118
        %v1167 = vpack.c.b16 %v1121, %v1120
        %v1168 = vpack.c.b16 %v1123, %v1122
        %v1169 = vpack.c.b16 %v1125, %v1124
        %v1170 = vpack.c.b16 %v1127, %v1126
        %v1171 = vpack.c.b16 %v1129, %v1128
        %v1172 = vpack.c.b16 %v1131, %v1130
        %v1173 = vpack.c.b16 %v1133, %v1132
        %v1174 = vpack.c.b16 %v1135, %v1134
        %v1175 = vpack.c.b16 %v1137, %v1136
        %v1176 = vpack.c.b16 %v1139, %v1138
        %v1177 = vpack.c.b16 %v1141, %v1140
        %v1178 = vpack.c.b16 %v1143, %v1142
        %v1179 = vpack.c.b16 %v1145, %v1144
        %v1180 = vpack.c.b16 %v1147, %v1146
        %v1181 = vpack.c.b16 %v1149, %v1148
        %1214 = vmatprep.subr.bf16.mxu0 0
        %1215 = vmatpush1.bf16.msra.mxu0 %v1150
        %1216 = vmatprep.subr.bf16.mxu0 0
        %1217 = vmatpush1.bf16.msra.mxu0 %v1151
        %1218 = vmatprep.subr.bf16.mxu0 0
        %1219 = vmatpush1.bf16.msra.mxu0 %v1152
        %1220 = vmatprep.subr.bf16.mxu0 0
        %1221 = vmatpush1.bf16.msra.mxu0 %v1153
        %1222 = vmatprep.subr.bf16.mxu0 0
        %1223 = vmatpush1.bf16.msra.mxu0 %v1154
        %1224 = vmatprep.subr.bf16.mxu0 0
        %1225 = vmatpush1.bf16.msra.mxu0 %v1155
        %1226 = vmatprep.subr.bf16.mxu0 0
        %1227 = vmatpush1.bf16.msra.mxu0 %v1156
        %1228 = vmatprep.subr.bf16.mxu0 0
        %1229 = vmatpush1.bf16.msra.mxu0 %v1157
        %1230 = vmatprep.subr.bf16.mxu0 0
        %1231 = vmatpush1.bf16.msra.mxu0 %v1158
        %1232 = vmatprep.subr.bf16.mxu0 0
        %1233 = vmatpush1.bf16.msra.mxu0 %v1159
        %1234 = vmatprep.subr.bf16.mxu0 0
        %1235 = vmatpush1.bf16.msra.mxu0 %v1160
        %1236 = vmatprep.subr.bf16.mxu0 0
        %1237 = vmatpush1.bf16.msra.mxu0 %v1161
        %1238 = vmatprep.subr.bf16.mxu0 0
        %1239 = vmatpush1.bf16.msra.mxu0 %v1162
        %1240 = vmatprep.subr.bf16.mxu0 0
        %1241 = vmatpush1.bf16.msra.mxu0 %v1163
        %1242 = vmatprep.subr.bf16.mxu0 0
        %1243 = vmatpush1.bf16.msra.mxu0 %v1164
        %1244 = vmatprep.subr.bf16.mxu0 0
        %1245 = vmatpush1.bf16.msra.mxu0 %v1165
        %1246 = vmatprep.mubr.bf16.mxu0 %v936
        %1247 = vmatmul.mubr.bf16.gmra.mrb[0].mxu0 %v935
        %v1248 = vpop.f32.mrb[0].mxu0
        %v1249 = vadd.f32 %v1020, %v1248
        %v1250 = vpop.f32.mrb[0].mxu0
        %v1251 = vpop.f32.mrb[0].mxu0
        %v1252 = vadd.f32 %v1020, %v1251
        %v1253 = vpop.f32.mrb[0].mxu0
        %1254 = vmatprep.mubr.bf16.mxu0 %v940
        %1255 = vmatmul.mubr.bf16.gmra.mrb[0].mxu0 %v939
        %v1256 = vpop.f32.mrb[0].mxu0
        %v1257 = vadd.f32 %v1020, %v1256
        %v1258 = vpop.f32.mrb[0].mxu0
        %v1259 = vpop.f32.mrb[0].mxu0
        %v1260 = vadd.f32 %v1020, %v1259
        %v1261 = vpop.f32.mrb[0].mxu0
        %1262 = vmatprep.mubr.bf16.mxu0 %v944
        %1263 = vmatmul.mubr.bf16.gmra.mrb[0].mxu0 %v943
        %v1264 = vpop.f32.mrb[0].mxu0
        %v1265 = vadd.f32 %v1020, %v1264
        %v1266 = vpop.f32.mrb[0].mxu0
        %v1267 = vpop.f32.mrb[0].mxu0
        %v1268 = vadd.f32 %v1020, %v1267
        %v1269 = vpop.f32.mrb[0].mxu0
        %1270 = vmatprep.mubr.bf16.mxu0 %v948
        %1271 = vmatmul.mubr.bf16.gmra.mrb[0].mxu0 %v947
        %v1272 = vpop.f32.mrb[0].mxu0
        %v1273 = vadd.f32 %v1020, %v1272
        %v1274 = vpop.f32.mrb[0].mxu0
        %v1275 = vpop.f32.mrb[0].mxu0
        %v1276 = vadd.f32 %v1020, %v1275
        %v1277 = vpop.f32.mrb[0].mxu0
        %1278 = vdwg.mxu0
        %1279 = vmatprep.subr.bf16.mxu0 0
        %1280 = vmatpush1.bf16.msra.mxu0 %v1166
        %1281 = vmatprep.subr.bf16.mxu0 0
        %1282 = vmatpush1.bf16.msra.mxu0 %v1167
        %1283 = vmatprep.subr.bf16.mxu0 0
        %1284 = vmatpush1.bf16.msra.mxu0 %v1168
        %1285 = vmatprep.subr.bf16.mxu0 0
        %1286 = vmatpush1.bf16.msra.mxu0 %v1169
        %1287 = vmatprep.subr.bf16.mxu0 0
        %1288 = vmatpush1.bf16.msra.mxu0 %v1170
        %1289 = vmatprep.subr.bf16.mxu0 0
        %1290 = vmatpush1.bf16.msra.mxu0 %v1171
        %1291 = vmatprep.subr.bf16.mxu0 0
        %1292 = vmatpush1.bf16.msra.mxu0 %v1172
        %1293 = vmatprep.subr.bf16.mxu0 0
        %1294 = vmatpush1.bf16.msra.mxu0 %v1173
        %1295 = vmatprep.subr.bf16.mxu0 0
        %1296 = vmatpush1.bf16.msra.mxu0 %v1174
        %1297 = vmatprep.subr.bf16.mxu0 0
        %1298 = vmatpush1.bf16.msra.mxu0 %v1175
        %1299 = vmatprep.subr.bf16.mxu0 0
        %1300 = vmatpush1.bf16.msra.mxu0 %v1176
        %1301 = vmatprep.subr.bf16.mxu0 0
        %1302 = vmatpush1.bf16.msra.mxu0 %v1177
        %1303 = vmatprep.subr.bf16.mxu0 0
        %1304 = vmatpush1.bf16.msra.mxu0 %v1178
        %1305 = vmatprep.subr.bf16.mxu0 0
        %1306 = vmatpush1.bf16.msra.mxu0 %v1179
        %1307 = vmatprep.subr.bf16.mxu0 0
        %1308 = vmatpush1.bf16.msra.mxu0 %v1180
        %1309 = vmatprep.subr.bf16.mxu0 0
        %1310 = vmatpush1.bf16.msra.mxu0 %v1181
        %1311 = vmatprep.mubr.bf16.mxu0 %v938
        %1312 = vmatmul.mubr.bf16.gmra.mrb[0].mxu0 %v937
        %v1313 = vpop.f32.mrb[0].mxu0
        %v1314 = vadd.f32 %v1249, %v1313
        %v1315 = vpop.f32.mrb[0].mxu0
        %v1316 = vpop.f32.mrb[0].mxu0
        %v1317 = vadd.f32 %v1252, %v1316
        %v1318 = vpop.f32.mrb[0].mxu0
        %1319 = vmatprep.mubr.bf16.mxu0 %v942
        %1320 = vmatmul.mubr.bf16.gmra.mrb[0].mxu0 %v941
        %v1321 = vpop.f32.mrb[0].mxu0
        %v1322 = vadd.f32 %v1257, %v1321
        %v1323 = vpop.f32.mrb[0].mxu0
        %v1324 = vpop.f32.mrb[0].mxu0
        %v1325 = vadd.f32 %v1260, %v1324
        %v1326 = vpop.f32.mrb[0].mxu0
        %1327 = vmatprep.mubr.bf16.mxu0 %v946
        %1328 = vmatmul.mubr.bf16.gmra.mrb[0].mxu0 %v945
        %v1329 = vpop.f32.mrb[0].mxu0
        %v1330 = vadd.f32 %v1265, %v1329
        %v1331 = vpop.f32.mrb[0].mxu0
        %v1332 = vpop.f32.mrb[0].mxu0
        %v1333 = vadd.f32 %v1268, %v1332
        %v1334 = vpop.f32.mrb[0].mxu0
        %1335 = vmatprep.mubr.bf16.mxu0 %v950
        %1336 = vmatmul.mubr.bf16.gmra.mrb[0].mxu0 %v949
        %v1337 = vpop.f32.mrb[0].mxu0
        %v1338 = vadd.f32 %v1273, %v1337
        %v1339 = vpop.f32.mrb[0].mxu0
        %v1340 = vpop.f32.mrb[0].mxu0
        %v1341 = vadd.f32 %v1276, %v1340
        %v1342 = vpop.f32.mrb[0].mxu0
        %1343 = vdwg.mxu0
        %1344 = vst [vmem:[%s271] sm:$0xff] %v1314
        %1345 = vst [vmem:[%s271 + $0x8] sm:$0xff] %v1317
        %1346 = vst [vmem:[%s271 + $0x10] sm:$0xff] %v1322
        %1347 = vst [vmem:[%s271 + $0x18] sm:$0xff] %v1325
        %1348 = vst [vmem:[%s271 + $0x20] sm:$0xff] %v1330
        %1349 = vst [vmem:[%s271 + $0x28] sm:$0xff] %v1333
        %1350 = vst [vmem:[%s271 + $0x30] sm:$0xff] %v1338
        %1351 = vst [vmem:[%s271 + $0x38] sm:$0xff] %v1341
        %s1352 = sand.u32 %s141, 1
        %s1353 = scalar_lea.sflag [#allocation4], %s1352
        %s1354 = sand.u32 %s141, 1
        %s1355 = smul.addr %s1354, 64
        %s1356 = scalar_lea.vmem [#allocation8], %s1355
        // Predicated region
        $region53: #{tpu_custom_call.1} parent=39 // pred_check
          %p1357 = pneg %p151
        $region54: #{tpu_custom_call.1} parent=39 // pred_check_branch
          %1359 = sbr.rel (%p1357) target = $region56
        $region55: #{tpu_custom_call.1} parent=39 // pred_region
          %s1360 = smul.u32 8, %s23
          %s1362 = ssub.s32 1024, 1024
          %1363 = vsyncadd %s1353, %s1362
          %s1364 = smul.addr %s1360, 128
          %s1365 = scalar_lea.hbm %s5, %s1364
          %s1366 = sshll.u32 %s1356, 4
          %s1367 = int_to_ptr.vmem [resolvable:$true] %s1366
          %1372 = dma.vmem_to_hbm [thread:$0]  %s1367, 1024, %s1365, %s1353, 128, 128, 8
        $region56: #{tpu_custom_call.1} parent=39 // pred_fallthru
          _
      $region40: #{tpu_custom_call.1} parent=5 // pred_fallthru
        _
      %p1373 = scmp.le.s32.totalorder 2, %s18
      // Predicated region
      $region57: #{tpu_custom_call.1} parent=5 // pred_check
        %p1374 = pneg %p1373
      $region58: #{tpu_custom_call.1} parent=5 // pred_check_branch
        %1376 = sbr.rel (%p1374) target = $region60
      $region59: #{tpu_custom_call.1} parent=5 // pred_region
        %s1377 = ssub.s32 %s18, 2
        // Predicated region
        $region61: #{tpu_custom_call.1} parent=59 // pred_check
          %p1378 = pneg %p157
        $region62: #{tpu_custom_call.1} parent=59 // pred_check_branch
          %1380 = sbr.rel (%p1378) target = $region64
        $region63: #{tpu_custom_call.1} parent=59 // pred_region
          %s1381 = sand.u32 %s142, 1
          %s1382 = scalar_lea.sflag [#allocation4], %s1381
          %s1383 = sand.u32 %s142, 1
          %s1384 = smul.addr %s1383, 64
          %s1385 = scalar_lea.vmem [#allocation8], %s1384
          %1386 = dma.done %s1382, 1024
        $region64: #{tpu_custom_call.1} parent=59 // pred_fallthru
          _
      $region60: #{tpu_custom_call.1} parent=5 // pred_fallthru
        _
    $region6: #{tpu_custom_call.1} parent=1 // loop_footer
      %s22 = sadd.s32 1, %s18
    $region7: #{tpu_custom_call.1} parent=1 // loop_footer_branch
      %17 = sbr.rel target = $region3
    $region8: #{tpu_custom_call.1} parent=1 // loop_exit
      _
    %1387 = vsyncpa [#allocation3], 1
    %s1388 = scalar_lea.sflag [#allocation3], 1
    %1389 = vsyncpa %s1388, 1
    %1390 = vsyncpa [#allocation6], 1
    %1391 = vsyncpa [#allocation4], 1
    %s1392 = scalar_lea.sflag [#allocation4], 1
    %1393 = vsyncpa %s1392, 1

</llo_original>
